<compile_context>
chip_gen: v5e
topology: v5e:2x2
jax: 0.10.0
libtpu: 0.0.40
codegen_flags: <defaults>
</compile_context>

<pallas_src>
import jax
import jax.numpy as jnp
from jax.experimental import pallas as pl
from jax.experimental.pallas import tpu as pltpu


def _pick_lane_width(total):
    """Largest multiple-of-128 lane width that exactly divides D*H*W."""
    for cand in (512, 256, 128):
        if total % cand == 0:
            return cand
    return None


def _auto_chunk_rows(lane):
    """Rows per in-kernel fold chunk: keep the resident acc ~<=128KiB f32."""
    return max(8, min(256, (32768 // max(lane, 1)) // 8 * 8))


def _pick_row_tile(rows, lane, chunk, target_elems):
    """Rows per grid tile: multiple of `chunk`, near target, prefer a divisor
    of `rows` so no ragged-tail masking is needed."""
    if rows <= chunk:
        return rows                       # single full-extent tile
    max_tr = (rows // chunk) * chunk
    t0 = max(chunk, (max(target_elems, lane) // lane) // chunk * chunk)
    t0 = min(t0, max_tr)
    t, lo = t0, max(chunk, t0 // 2)
    while t >= lo:                        # look for an exact divisor of rows
        if rows % t == 0:
            return t
        t -= chunk
    return t0                             # ragged last tile, masked in-kernel


def _dice_partial_sums(x4, y3, *, rows, lane, tr, acc_r, n_row_tiles,
                       n_parts, tiles_per_part, vmem_limit_bytes):
    """x4: (N, C, rows, lane); y3: (N, rows, lane).
    Returns two (N, n_parts, acc_r, lane) f32 arrays whose total sums equal
    sum(x[:,1]*y) and sum(x[:,1]+y)."""
    N = x4.shape[0]
    n_chunks = tr // acc_r
    needs_mask = (rows % tr) != 0

    def kernel(x_ref, y_ref, num_ref, den_ref):
        p = pl.program_id(1)
        r = pl.program_id(2)
        g = p * tiles_per_part + r        # global row-tile index
        tile_row0 = g * tr                # first global row of this tile

        @pl.when(r == 0)
        def _():
            num_ref[...] = jnp.zeros_like(num_ref)
            den_ref[...] = jnp.zeros_like(den_ref)

        def add(xs, ys, row0, masked):
            xs = xs.astype(jnp.float32)
            ys = ys.astype(jnp.float32)
            if masked:
                # Rows past the end of the array hold unspecified data; the
                # select zeroes them before any arithmetic.
                rem = rows - row0
                rid = jax.lax.broadcasted_iota(jnp.int32, (xs.shape[0], 1), 0)
                keep = rid < rem
                xs = jnp.where(keep, xs, 0.0)
                ys = jnp.where(keep, ys, 0.0)
            num_ref[...] += xs * ys
            den_ref[...] += xs + ys

        def accumulate(masked):
            if n_chunks == 1:
                add(x_ref[...], y_ref[...], tile_row0, masked)
            else:
                def body(c, carry):
                    off = pl.multiple_of(c * acc_r, acc_r)
                    add(x_ref[pl.ds(off, acc_r), :],
                        y_ref[pl.ds(off, acc_r), :],
                        tile_row0 + off, masked)
                    return carry
                jax.lax.fori_loop(0, n_chunks, body, 0,
                                  unroll=(n_chunks <= 8))

        if needs_mask:
            is_last = g == (n_row_tiles - 1)

            @pl.when(is_last)
            def _():
                accumulate(True)

            @pl.when(g != (n_row_tiles - 1))
            def _():
                accumulate(False)
        else:
            accumulate(False)

    out_sds = jax.ShapeDtypeStruct((N, n_parts, acc_r, lane), jnp.float32)
    num_part, den_part = pl.pallas_call(
        kernel,
        out_shape=(out_sds, out_sds),
        grid_spec=pltpu.PrefetchScalarGridSpec(
            num_scalar_prefetch=0,
            grid=(N, n_parts, tiles_per_part),
            in_specs=[
                # Channel block index pinned to 1: only channel-1 data is DMA'd.
                pl.BlockSpec((None, None, tr, lane),
                             lambda n, p, r: (n, 1, p * tiles_per_part + r, 0)),
                pl.BlockSpec((None, tr, lane),
                             lambda n, p, r: (n, p * tiles_per_part + r, 0)),
            ],
            out_specs=[
                pl.BlockSpec((None, None, acc_r, lane),
                             lambda n, p, r: (n, p, 0, 0)),
                pl.BlockSpec((None, None, acc_r, lane),
                             lambda n, p, r: (n, p, 0, 0)),
            ],
        ),
        compiler_params=pltpu.CompilerParams(
            dimension_semantics=("parallel", "parallel", "arbitrary"),
            vmem_limit_bytes=vmem_limit_bytes,
        ),
    )(x4, y3)
    return num_part, den_part


def dice_loss(inputs, labels, epsilon=1e-6, *, target_block_elems=1024 * 1024,
              chunk_rows=None, vmem_limit_bytes=48 * 1024 * 1024):
    """inputs: (N, C, D, H, W); labels: (N, D, H, W). Returns scalar 1 - dice."""
    N, C, D, H, W = inputs.shape
    assert C >= 2, "DiceLoss takes channel 1 of inputs; need C >= 2"
    assert labels.shape == (N, D, H, W)

    # Layout-preserving (free) reshapes to a lane-dense (rows, lane) plane.
    total = D * H * W
    lane = _pick_lane_width(total)
    if lane is None:
        rows, lane = D * H, W             # copy-free fallback (not lane dense)
    else:
        rows = total // lane
    x4 = inputs.reshape(N, C, rows, lane)       # keep native dtype
    y3 = labels.reshape(N, rows, lane)

    chunk = (_auto_chunk_rows(lane) if chunk_rows is None
             else max(8, (int(chunk_rows) // 8) * 8))
    tr = _pick_row_tile(rows, lane, chunk, target_block_elems)
    acc_r = min(chunk, tr)
    n_row_tiles = pl.cdiv(rows, tr)
    # Split the row reduction in two independent partial accumulators when it
    # divides evenly: feeds both v7x TensorCores even at N == 1.
    n_parts = 2 if (n_row_tiles % 2 == 0) else 1
    tiles_per_part = n_row_tiles // n_parts

    num_part, den_part = _dice_partial_sums(
        x4, y3, rows=rows, lane=lane, tr=tr, acc_r=acc_r,
        n_row_tiles=n_row_tiles, n_parts=n_parts,
        tiles_per_part=tiles_per_part, vmem_limit_bytes=vmem_limit_bytes)

    num = jnp.sum(num_part)               # tiny (N, P, acc_r, lane) reductions
    den = jnp.sum(den_part)
    dice = 2.0 * num / (den + epsilon)    # epsilon only in denominator, as in spec
    return 1.0 - dice


def dice_loss_ref(inputs, labels, epsilon=1e-6):
    x = inputs[:, 1, :, :, :].reshape(-1).astype(jnp.float32)
    y = labels.reshape(-1).astype(jnp.float32)
    return 1.0 - 2.0 * jnp.sum(x * y) / (jnp.sum(x + y) + epsilon)


if __name__ == "__main__":
    key = jax.random.PRNGKey(0)
    ks = jax.random.split(key, 6)

    def make_case(ka, kb, shape):
        N, C, D, H, W = shape
        x = jax.nn.softmax(
            jax.random.normal(ka, (N, C, D, H, W), dtype=jnp.float32), axis=1)
        y = (jax.random.uniform(kb, (N, D, H, W)) > 0.5).astype(jnp.float32)
        return x, y

    # Case 1: lane-dense single tile (D*H*W = 512 -> lane 512, rows 1).
    x1, y1 = make_case(ks[0], ks[1], (2, 4, 4, 8, 16))
    out1 = jax.block_until_ready(dice_loss(x1, y1))
    ref1 = jax.block_until_ready(dice_loss_ref(x1, y1))
    assert jnp.allclose(out1, ref1, rtol=1e-5, atol=1e-6), (out1, ref1)

    # Case 2: multi-tile accumulation, ragged last-tile masking and the
    # two-partition reduction split (D*H*W = 1152 = 9*128 -> rows 9, tiles of 8).
    x2, y2 = make_case(ks[2], ks[3], (1, 3, 3, 3, 128))
    out2 = jax.block_until_ready(
        dice_loss(x2, y2, target_block_elems=8 * 128, chunk_rows=8))
    ref2 = jax.block_until_ready(dice_loss_ref(x2, y2))
    assert jnp.allclose(out2, ref2, rtol=1e-5, atol=1e-6), (out2, ref2)

    # Case 3: D*H*W not divisible by 128 -> copy-free fallback layout (D*H, W).
    x3, y3 = make_case(ks[4], ks[5], (2, 2, 3, 5, 12))
    out3 = jax.block_until_ready(dice_loss(x3, y3))
    ref3 = jax.block_until_ready(dice_loss_ref(x3, y3))
    assert jnp.allclose(out3, ref3, rtol=1e-5, atol=1e-6), (out3, ref3)

    print("KERNEL_OK")
</pallas_src>

<mosaic_0001>
module attributes {stable_mosaic.version = 11 : i64} {
  func.func @kernel(%arg0: i32, %arg1: i32, %arg2: i32, %arg3: memref<1x1x1x512xf32, #tpu.memory_space<vmem>>, %arg4: memref<1x1x512xf32, #tpu.memory_space<vmem>>, %arg5: memref<1x1x1x512xf32, #tpu.memory_space<vmem>>, %arg6: memref<1x1x1x512xf32, #tpu.memory_space<vmem>>) attributes {dimension_semantics = [#tpu.dimension_semantics<parallel>, #tpu.dimension_semantics<parallel>, #tpu.dimension_semantics<arbitrary>], iteration_bounds = array<i64: 2, 1, 1>, scalar_prefetch = 0 : i64, scratch_operands = 0 : i64, tpu.core_type = #tpu.core_type<tc>, window_params = [{transform_indices = @transform_0, window_bounds = array<i64: 1, 1, 1, 512>}, {transform_indices = @transform_1, window_bounds = array<i64: 1, 1, 512>}, {transform_indices = @transform_2, window_bounds = array<i64: 1, 1, 1, 512>}, {transform_indices = @transform_3, window_bounds = array<i64: 1, 1, 1, 512>}]} {
    %c0_i32 = arith.constant 0 : i32
    %0 = arith.cmpi eq, %arg2, %c0_i32 : i32
    %1 = arith.extui %0 : i1 to i32
    %c0_i32_0 = arith.constant 0 : i32
    %2 = arith.cmpi ne, %1, %c0_i32_0 : i32
    scf.if %2 {
      %cst = arith.constant 0.000000e+00 : f32
      %21 = vector.broadcast %cst : f32 to vector<1x512xf32>
      %c0_23 = arith.constant 0 : index
      %c0_24 = arith.constant 0 : index
      %c0_25 = arith.constant 0 : index
      %c0_26 = arith.constant 0 : index
      %22 = vector.load %arg5[%c0_23, %c0_24, %c0_25, %c0_26] : memref<1x1x1x512xf32, #tpu.memory_space<vmem>>, vector<1x1x1x512xf32>
      %23 = vector.shape_cast %22 : vector<1x1x1x512xf32> to vector<1x512xf32>
      %24 = vector.shape_cast %21 : vector<1x512xf32> to vector<1x1x1x512xf32>
      tpu.vector_store %arg5[%c0_23, %c0_24, %c0_25, %c0_26], %24 {strides = array<i32>} : memref<1x1x1x512xf32, #tpu.memory_space<vmem>>, vector<1x1x1x512xf32>,
      %cst_27 = arith.constant 0.000000e+00 : f32
      %25 = vector.broadcast %cst_27 : f32 to vector<1x512xf32>
      %c0_28 = arith.constant 0 : index
      %c0_29 = arith.constant 0 : index
      %c0_30 = arith.constant 0 : index
      %c0_31 = arith.constant 0 : index
      %26 = vector.load %arg6[%c0_28, %c0_29, %c0_30, %c0_31] : memref<1x1x1x512xf32, #tpu.memory_space<vmem>>, vector<1x1x1x512xf32>
      %27 = vector.shape_cast %26 : vector<1x1x1x512xf32> to vector<1x512xf32>
      %28 = vector.shape_cast %25 : vector<1x512xf32> to vector<1x1x1x512xf32>
      tpu.vector_store %arg6[%c0_28, %c0_29, %c0_30, %c0_31], %28 {strides = array<i32>} : memref<1x1x1x512xf32, #tpu.memory_space<vmem>>, vector<1x1x1x512xf32>,
    } else {
    }
    %c0 = arith.constant 0 : index
    %c0_1 = arith.constant 0 : index
    %c0_2 = arith.constant 0 : index
    %c0_3 = arith.constant 0 : index
    %3 = vector.load %arg3[%c0, %c0_1, %c0_2, %c0_3] : memref<1x1x1x512xf32, #tpu.memory_space<vmem>>, vector<1x1x1x512xf32>
    %4 = vector.shape_cast %3 : vector<1x1x1x512xf32> to vector<1x512xf32>
    %c0_4 = arith.constant 0 : index
    %c0_5 = arith.constant 0 : index
    %c0_6 = arith.constant 0 : index
    %5 = vector.load %arg4[%c0_4, %c0_5, %c0_6] : memref<1x1x512xf32, #tpu.memory_space<vmem>>, vector<1x1x512xf32>
    %6 = vector.shape_cast %5 : vector<1x1x512xf32> to vector<1x512xf32>
    %c0_7 = arith.constant 0 : index
    %c0_8 = arith.constant 0 : index
    %c0_9 = arith.constant 0 : index
    %c0_10 = arith.constant 0 : index
    %7 = vector.load %arg5[%c0_7, %c0_8, %c0_9, %c0_10] : memref<1x1x1x512xf32, #tpu.memory_space<vmem>>, vector<1x1x1x512xf32>
    %8 = vector.shape_cast %7 : vector<1x1x1x512xf32> to vector<1x512xf32>
    %9 = arith.mulf %4, %6 : vector<1x512xf32>
    %10 = arith.addf %8, %9 : vector<1x512xf32>
    %c0_11 = arith.constant 0 : index
    %c0_12 = arith.constant 0 : index
    %c0_13 = arith.constant 0 : index
    %c0_14 = arith.constant 0 : index
    %11 = vector.load %arg5[%c0_11, %c0_12, %c0_13, %c0_14] : memref<1x1x1x512xf32, #tpu.memory_space<vmem>>, vector<1x1x1x512xf32>
    %12 = vector.shape_cast %11 : vector<1x1x1x512xf32> to vector<1x512xf32>
    %13 = vector.shape_cast %10 : vector<1x512xf32> to vector<1x1x1x512xf32>
    tpu.vector_store %arg5[%c0_11, %c0_12, %c0_13, %c0_14], %13 {strides = array<i32>} : memref<1x1x1x512xf32, #tpu.memory_space<vmem>>, vector<1x1x1x512xf32>,
    %c0_15 = arith.constant 0 : index
    %c0_16 = arith.constant 0 : index
    %c0_17 = arith.constant 0 : index
    %c0_18 = arith.constant 0 : index
    %14 = vector.load %arg6[%c0_15, %c0_16, %c0_17, %c0_18] : memref<1x1x1x512xf32, #tpu.memory_space<vmem>>, vector<1x1x1x512xf32>
    %15 = vector.shape_cast %14 : vector<1x1x1x512xf32> to vector<1x512xf32>
    %16 = arith.addf %4, %6 : vector<1x512xf32>
    %17 = arith.addf %15, %16 : vector<1x512xf32>
    %c0_19 = arith.constant 0 : index
    %c0_20 = arith.constant 0 : index
    %c0_21 = arith.constant 0 : index
    %c0_22 = arith.constant 0 : index
    %18 = vector.load %arg6[%c0_19, %c0_20, %c0_21, %c0_22] : memref<1x1x1x512xf32, #tpu.memory_space<vmem>>, vector<1x1x1x512xf32>
    %19 = vector.shape_cast %18 : vector<1x1x1x512xf32> to vector<1x512xf32>
    %20 = vector.shape_cast %17 : vector<1x512xf32> to vector<1x1x1x512xf32>
    tpu.vector_store %arg6[%c0_19, %c0_20, %c0_21, %c0_22], %20 {strides = array<i32>} : memref<1x1x1x512xf32, #tpu.memory_space<vmem>>, vector<1x1x1x512xf32>,
    return
  }
  func.func @transform_0(%arg0: i32, %arg1: i32, %arg2: i32) -> (i32, i32, i32, i32) {
    %c1_i32 = arith.constant 1 : i32
    %0 = arith.muli %arg1, %c1_i32 : i32
    %1 = arith.addi %0, %arg2 : i32
    %c1_i32_0 = arith.constant 1 : i32
    %c0_i32 = arith.constant 0 : i32
    %c0_i32_1 = arith.constant 0 : i32
    return %arg0, %c1_i32_0, %1, %c0_i32 : i32, i32, i32, i32
  }
  func.func @transform_1(%arg0: i32, %arg1: i32, %arg2: i32) -> (i32, i32, i32) {
    %c1_i32 = arith.constant 1 : i32
    %0 = arith.muli %arg1, %c1_i32 : i32
    %1 = arith.addi %0, %arg2 : i32
    %c0_i32 = arith.constant 0 : i32
    %c0_i32_0 = arith.constant 0 : i32
    return %arg0, %1, %c0_i32 : i32, i32, i32
  }
  func.func @transform_2(%arg0: i32, %arg1: i32, %arg2: i32) -> (i32, i32, i32, i32) {
    %c0_i32 = arith.constant 0 : i32
    %c0_i32_0 = arith.constant 0 : i32
    %c0_i32_1 = arith.constant 0 : i32
    return %arg0, %arg1, %c0_i32, %c0_i32_0 : i32, i32, i32, i32
  }
  func.func @transform_3(%arg0: i32, %arg1: i32, %arg2: i32) -> (i32, i32, i32, i32) {
    %c0_i32 = arith.constant 0 : i32
    %c0_i32_0 = arith.constant 0 : i32
    %c0_i32_1 = arith.constant 0 : i32
    return %arg0, %arg1, %c0_i32, %c0_i32_0 : i32, i32, i32, i32
  }
}

</mosaic_0001>

<llo_original>
// kernel: tpu_custom_call.1
$region0: #{tpu_custom_call.1}
  #allocation0 [shape = 'u32[]', space=smem, size = 0x4, offset = 0x4, fixed_abs, tag = 'smem constant byte address 0x4 - core index']
  #allocation1 [shape = 'u32[72,128]{1,0:T(1,128)}', space=vmem, size = 0x9000, scoped, tag = 'internal scratch']
  %s0 = inlined_call_operand.hbm [shape: f32[2,4,1,512], index: 0, kind: input, shape index: {}]
  %s1 = inlined_call_operand.hbm [shape: f32[2,1,512], index: 1, kind: input, shape index: {}]
  %s2 = inlined_call_operand.hbm [shape: f32[2,1,1,512], index: 2, kind: output, shape index: {0}]
  %s3 = inlined_call_operand.hbm [shape: f32[2,1,1,512], index: 3, kind: output, shape index: {1}]
  %4 = xla_tuple %s2, %s3
  %s5 = sld [smem:[#allocation0]]
  $region61: #{tpu_custom_call.1} parent=0
    _
  %s7 = ssub.s32 1, %s5
  %s8 = scalar_select 0, %s7, %s5
  $region1: #{tpu_custom_call.1} parent=0
    #allocation2 [shape = 'u8[4096]{0}', space=vmem, size = 0x1000, scoped, tag = 'input window, operand 0']
    #allocation3 [shape = 's32[2]{0}', space=sflag, size = 0x8, scoped, tag = 'scoped memory for tpu_custom_call.1']
    #allocation4 [shape = 's32[2]{0}', space=sflag, size = 0x8, scoped, tag = 'scoped memory for tpu_custom_call.1']
    #allocation5 [shape = 'u8[4096]{0}', space=vmem, size = 0x1000, scoped, tag = 'input window, operand 1']
    #allocation6 [shape = 's32[2]{0}', space=sflag, size = 0x8, scoped, tag = 'scoped memory for tpu_custom_call.1']
    #allocation7 [shape = 'u8[4096]{0}', space=vmem, size = 0x1000, scoped, tag = 'output window, operand 0']
    #allocation8 [shape = 'u8[4096]{0}', space=vmem, size = 0x1000, scoped, tag = 'output window, operand 1']
    #allocation9 [shape = 's32[2]{0}', space=sflag, size = 0x8, scoped, tag = 'scoped memory for tpu_custom_call.1']
    %9 = vsyncpa [#allocation3], 0
    %s10 = scalar_lea.sflag [#allocation3], 1
    %11 = vsyncpa %s10, 0
    %12 = vsyncpa [#allocation6], 0
    %s13 = scalar_lea.sflag [#allocation6], 1
    %14 = vsyncpa %s13, 0
    %15 = vsyncpa [#allocation4], 0
    %s16 = scalar_lea.sflag [#allocation4], 1
    %17 = vsyncpa %s16, 0
    %18 = vsyncpa [#allocation9], 0
    %s19 = scalar_lea.sflag [#allocation9], 1
    %20 = vsyncpa %s19, 0
    loop: start=0, step=1, limit=4
    $region2: #{tpu_custom_call.1} parent=1 // loop_pre_header
      _
    $region3: #{tpu_custom_call.1} parent=1 // loop_header
      %s22 = sphi 0, %s26
      %p23 = scmp.ge.s32.totalorder %s22, 4
      %s29 = sphi 0, %s48
      %s30 = sphi 0, %s44
      %s31 = sphi 0, %s40
      %s32 = sphi 0, %s29
      %s33 = sphi 0, %s30
      %s34 = sphi 0, %s31
      %s35 = sphi 0, %s32
      %s36 = sphi 0, %s33
      %s37 = sphi 0, %s34
      %s55 = sphi 0, %s57
      %s58 = sphi 0, %s55
      %s59 = sphi 0, %s58
      %s75 = sphi 0, %s59
      %s85 = sphi 0, %s87
      %s88 = sphi 0, %s85
      %s89 = sphi 0, %s88
      %s105 = sphi 0, %s89
      %s113 = sphi 0, %s115
      %s116 = sphi 0, %s113
      %s117 = sphi 0, %s116
      %s133 = sphi 0, %s117
      %s141 = sphi 0, %s143
      %s144 = sphi 0, %s141
      %s145 = sphi 0, %s144
      %s161 = sphi 0, %s145
    $region4: #{tpu_custom_call.1} parent=1 // loop_header_branch
      %25 = sbr.rel (%p23) target = $region8
    $region5: #{tpu_custom_call.1} parent=1 // loop_body
      %s27 = ssub.s32 %s22, 1
      %s28 = ssub.s32 %s22, 2
      %s38 = sadd.s32 1, %s31
      %p39 = scmp.ge.s32.totalorder %s38, 1
      %s40 = scalar_select %p39, 0, %s38
      %s41 = sadd.s32 1, %s30
      %s42 = scalar_select %p39, %s41, %s30
      %p43 = scmp.ge.s32.totalorder %s42, 1
      %s44 = scalar_select %p43, 0, %s42
      %s45 = sadd.s32 1, %s29
      %s46 = scalar_select %p43, %s45, %s29
      %p47 = scmp.ge.s32.totalorder %s46, 2
      %s48 = scalar_select %p47, 0, %s46
      %s49 = sadd.s32 %s30, %s31
      %s50 = sadd.s32 %s44, %s40
      %s51 = ssub.s32 %s29, %s48
      %s52 = ssub.s32 %s49, %s50
      %s53 = sor.u32 %s51, %s52
      %p54 = scmp.eq.s32.totalorder %s53, 0
      %s56 = sadd.s32 %s55, 1
      %s57 = scalar_select %p54, %s55, %s56
      %p60 = pneg %p54
      %p61 = scmp.eq.s32.totalorder %s22, 1
      %p62 = por %p60, %p61
      %p63 = scmp.ne.s32.totalorder %s55, %s58
      %p64 = scmp.eq.s32.totalorder %s22, 0
      %p65 = por %p63, %p64
      %p66 = scmp.ne.s32.totalorder %s55, %s58
      %p67 = scmp.eq.s32.totalorder %s27, 1
      %p68 = por %p66, %p67
      %p69 = scmp.ne.s32.totalorder %s58, %s59
      %p70 = scmp.eq.s32.totalorder %s27, 0
      %p71 = por %p69, %p70
      %p72 = scmp.ne.s32.totalorder %s58, %s59
      %p73 = scmp.eq.s32.totalorder %s28, 1
      %p74 = por %p72, %p73
      %p76 = scmp.ne.s32.totalorder %s59, %s75
      %p77 = scmp.eq.s32.totalorder %s28, 0
      %p78 = por %p76, %p77
      %s79 = sadd.s32 %s30, %s31
      %s80 = sadd.s32 %s44, %s40
      %s81 = ssub.s32 %s29, %s48
      %s82 = ssub.s32 %s79, %s80
      %s83 = sor.u32 %s81, %s82
      %p84 = scmp.eq.s32.totalorder %s83, 0
      %s86 = sadd.s32 %s85, 1
      %s87 = scalar_select %p84, %s85, %s86
      %p90 = pneg %p84
      %p91 = scmp.eq.s32.totalorder %s22, 1
      %p92 = por %p90, %p91
      %p93 = scmp.ne.s32.totalorder %s85, %s88
      %p94 = scmp.eq.s32.totalorder %s22, 0
      %p95 = por %p93, %p94
      %p96 = scmp.ne.s32.totalorder %s85, %s88
      %p97 = scmp.eq.s32.totalorder %s27, 1
      %p98 = por %p96, %p97
      %p99 = scmp.ne.s32.totalorder %s88, %s89
      %p100 = scmp.eq.s32.totalorder %s27, 0
      %p101 = por %p99, %p100
      %p102 = scmp.ne.s32.totalorder %s88, %s89
      %p103 = scmp.eq.s32.totalorder %s28, 1
      %p104 = por %p102, %p103
      %p106 = scmp.ne.s32.totalorder %s89, %s105
      %p107 = scmp.eq.s32.totalorder %s28, 0
      %p108 = por %p106, %p107
      %s109 = ssub.s32 %s29, %s48
      %s110 = ssub.s32 %s30, %s44
      %s111 = sor.u32 %s109, %s110
      %p112 = scmp.eq.s32.totalorder %s111, 0
      %s114 = sadd.s32 %s113, 1
      %s115 = scalar_select %p112, %s113, %s114
      %p118 = pneg %p112
      %p119 = scmp.eq.s32.totalorder %s22, 1
      %p120 = por %p118, %p119
      %p121 = scmp.ne.s32.totalorder %s113, %s116
      %p122 = scmp.eq.s32.totalorder %s22, 0
      %p123 = por %p121, %p122
      %p124 = scmp.ne.s32.totalorder %s113, %s116
      %p125 = scmp.eq.s32.totalorder %s27, 1
      %p126 = por %p124, %p125
      %p127 = scmp.ne.s32.totalorder %s116, %s117
      %p128 = scmp.eq.s32.totalorder %s27, 0
      %p129 = por %p127, %p128
      %p130 = scmp.ne.s32.totalorder %s116, %s117
      %p131 = scmp.eq.s32.totalorder %s28, 1
      %p132 = por %p130, %p131
      %p134 = scmp.ne.s32.totalorder %s117, %s133
      %p135 = scmp.eq.s32.totalorder %s28, 0
      %p136 = por %p134, %p135
      %s137 = ssub.s32 %s29, %s48
      %s138 = ssub.s32 %s30, %s44
      %s139 = sor.u32 %s137, %s138
      %p140 = scmp.eq.s32.totalorder %s139, 0
      %s142 = sadd.s32 %s141, 1
      %s143 = scalar_select %p140, %s141, %s142
      %p146 = pneg %p140
      %p147 = scmp.eq.s32.totalorder %s22, 1
      %p148 = por %p146, %p147
      %p149 = scmp.ne.s32.totalorder %s141, %s144
      %p150 = scmp.eq.s32.totalorder %s22, 0
      %p151 = por %p149, %p150
      %p152 = scmp.ne.s32.totalorder %s141, %s144
      %p153 = scmp.eq.s32.totalorder %s27, 1
      %p154 = por %p152, %p153
      %p155 = scmp.ne.s32.totalorder %s144, %s145
      %p156 = scmp.eq.s32.totalorder %s27, 0
      %p157 = por %p155, %p156
      %p158 = scmp.ne.s32.totalorder %s144, %s145
      %p159 = scmp.eq.s32.totalorder %s28, 1
      %p160 = por %p158, %p159
      %p162 = scmp.ne.s32.totalorder %s145, %s161
      %p163 = scmp.eq.s32.totalorder %s28, 0
      %p164 = por %p162, %p163
      %p165 = scmp.le.s32.totalorder 1, %s22
      %p166 = scmp.lt.s32.totalorder %s22, 3
      %p167 = pnand %p165, %p166
      %p168 = pneg %p167
      // Predicated region
      $region9: #{tpu_custom_call.1} parent=5 // pred_check
        _
      $region10: #{tpu_custom_call.1} parent=5 // pred_check_branch
        %170 = sbr.rel (%p167) target = $region12
      $region11: #{tpu_custom_call.1} parent=5 // pred_region
        %s171 = ssub.s32 %s22, 1
      $region12: #{tpu_custom_call.1} parent=5 // pred_fallthru
        _
      %p172 = scmp.lt.s32.totalorder %s22, 2
      // Predicated region
      $region13: #{tpu_custom_call.1} parent=5 // pred_check
        %p173 = pneg %p172
      $region14: #{tpu_custom_call.1} parent=5 // pred_check_branch
        %175 = sbr.rel (%p173) target = $region16
      $region15: #{tpu_custom_call.1} parent=5 // pred_region
        // Predicated region
        $region17: #{tpu_custom_call.1} parent=15 // pred_check
          %p176 = pneg %p65
        $region18: #{tpu_custom_call.1} parent=15 // pred_check_branch
          %178 = sbr.rel (%p176) target = $region20
        $region19: #{tpu_custom_call.1} parent=15 // pred_region
          %s179 = sand.u32 %s55, 1
          %s180 = scalar_lea.sflag [#allocation3], %s179
          %s181 = sand.u32 %s55, 1
          %s182 = smul.addr %s181, 4
          %s183 = scalar_lea.vmem [#allocation2], %s182
          %s184 = sadd.s32 %s30, %s31
          %186 = vsyncadd %s180, 0
          %s187 = smul.addr %s184, 4
          %s188 = sadd.s32 %s187, 4
          %s189 = smul.addr %s29, 16
          %s190 = sadd.s32 %s188, %s189
          %s191 = scalar_lea.hbm %s0, %s190
          %s193 = sshll.u32 %s191, 4
          %s194 = int_to_ptr.hbm [resolvable:$true] %s193
          %s195 = sshll.u32 %s183, 4
          %s196 = int_to_ptr.vmem [resolvable:$true] %s195
          %198 = dma.hbm_to_vmem [thread:$0]  %s194, 64, %s196, %s180
        $region20: #{tpu_custom_call.1} parent=15 // pred_fallthru
          _
        // Predicated region
        $region21: #{tpu_custom_call.1} parent=15 // pred_check
          %p199 = pneg %p95
        $region22: #{tpu_custom_call.1} parent=15 // pred_check_branch
          %201 = sbr.rel (%p199) target = $region24
        $region23: #{tpu_custom_call.1} parent=15 // pred_region
          %s202 = sand.u32 %s85, 1
          %s203 = scalar_lea.sflag [#allocation6], %s202
          %s204 = sand.u32 %s85, 1
          %s205 = smul.addr %s204, 4
          %s206 = scalar_lea.vmem [#allocation5], %s205
          %s207 = sadd.s32 %s30, %s31
          %209 = vsyncadd %s203, 0
          %s210 = smul.addr %s207, 4
          %s211 = smul.addr %s29, 4
          %s212 = sadd.s32 %s210, %s211
          %s213 = scalar_lea.hbm %s1, %s212
          %s215 = sshll.u32 %s213, 4
          %s216 = int_to_ptr.hbm [resolvable:$true] %s215
          %s217 = sshll.u32 %s206, 4
          %s218 = int_to_ptr.vmem [resolvable:$true] %s217
          %220 = dma.hbm_to_vmem [thread:$0]  %s216, 64, %s218, %s203
        $region24: #{tpu_custom_call.1} parent=15 // pred_fallthru
          _
      $region16: #{tpu_custom_call.1} parent=5 // pred_fallthru
        _
      %p221 = scmp.le.s32.totalorder 1, %s22
      %p222 = scmp.lt.s32.totalorder %s22, 3
      %p223 = pnand %p221, %p222
      %p224 = pneg %p223
      // Predicated region
      $region25: #{tpu_custom_call.1} parent=5 // pred_check
        _
      $region26: #{tpu_custom_call.1} parent=5 // pred_check_branch
        %226 = sbr.rel (%p223) target = $region28
      $region27: #{tpu_custom_call.1} parent=5 // pred_region
        %s227 = ssub.s32 %s22, 1
        %s228 = sand.u32 %s58, 1
        %s229 = scalar_lea.sflag [#allocation3], %s228
        %s230 = sand.u32 %s58, 1
        %s231 = smul.addr %s230, 4
        %s232 = scalar_lea.vmem [#allocation2], %s231
        // Predicated region
        $region29: #{tpu_custom_call.1} parent=27 // pred_check
          %p233 = pneg %p71
        $region30: #{tpu_custom_call.1} parent=27 // pred_check_branch
          %235 = sbr.rel (%p233) target = $region32
        $region31: #{tpu_custom_call.1} parent=27 // pred_region
          %237 = dma.done %s229, 64
        $region32: #{tpu_custom_call.1} parent=27 // pred_fallthru
          _
        %s238 = sand.u32 %s88, 1
        %s239 = scalar_lea.sflag [#allocation6], %s238
        %s240 = sand.u32 %s88, 1
        %s241 = smul.addr %s240, 4
        %s242 = scalar_lea.vmem [#allocation5], %s241
        // Predicated region
        $region33: #{tpu_custom_call.1} parent=27 // pred_check
          %p243 = pneg %p101
        $region34: #{tpu_custom_call.1} parent=27 // pred_check_branch
          %245 = sbr.rel (%p243) target = $region36
        $region35: #{tpu_custom_call.1} parent=27 // pred_region
          %247 = dma.done %s239, 64
        $region36: #{tpu_custom_call.1} parent=27 // pred_fallthru
          _
        %s248 = sand.u32 %s58, 1
        %s249 = scalar_lea.sflag [#allocation3], %s248
        %s250 = sand.u32 %s58, 1
        %s251 = smul.addr %s250, 4
        %s252 = scalar_lea.vmem [#allocation2], %s251
        %p253 = pneg %p71
        %p254 = pneg %p68
        %s255 = sand.u32 %s88, 1
        %s256 = scalar_lea.sflag [#allocation6], %s255
        %s257 = sand.u32 %s88, 1
        %s258 = smul.addr %s257, 4
        %s259 = scalar_lea.vmem [#allocation5], %s258
        %p260 = pneg %p101
        %p261 = pneg %p98
        %p262 = pneg %p129
        %p263 = pneg %p126
        %s264 = sand.u32 %s116, 1
        %s265 = scalar_lea.sflag [#allocation4], %s264
        %s266 = sand.u32 %s116, 1
        %s267 = smul.addr %s266, 4
        %s268 = scalar_lea.vmem [#allocation7], %s267
        %p269 = pneg %p157
        %p270 = pneg %p154
        %s271 = sand.u32 %s144, 1
        %s272 = scalar_lea.sflag [#allocation9], %s271
        %s273 = sand.u32 %s144, 1
        %s274 = smul.addr %s273, 4
        %s275 = scalar_lea.vmem [#allocation8], %s274
        %s276 = sadd.s32 %s33, %s34
        %s277 = sadd.s32 %s33, %s34
        %p278 = scmp.eq.s32.totalorder %s34, 0
        // Predicated region
        $region37: #{tpu_custom_call.1} parent=27 // pred_check
          %p279 = pneg %p278
        $region38: #{tpu_custom_call.1} parent=27 // pred_check_branch
          %281 = sbr.rel (%p279) target = $region40
        $region39: #{tpu_custom_call.1} parent=27 // pred_region
          %v282 = vlaneseq
          %vm283 = vcmp.ge.s32.totalorder %v282, 0
          %vm284 = vcmp.lt.s32.totalorder %v282, 512
          %vm285 = vmand %vm283, %vm284
          %286 = vst.msk [vmem:[%s268] sm:$0xf] %vm285, 0.0
          %287 = vst.msk [vmem:[%s275] sm:$0xf] %vm285, 0.0
        $region40: #{tpu_custom_call.1} parent=27 // pred_fallthru
          _
        %v288 = vld [vmem:[%s232] sm:$0xf]
        %v289 = vld [vmem:[%s242] sm:$0xf]
        %v290 = vld [vmem:[%s268] sm:$0xf]
        %v291 = vmul.f32 %v288, %v289
        %v292 = vadd.f32 %v290, %v291
        %v293 = vlaneseq
        %vm294 = vcmp.ge.s32.totalorder %v293, 0
        %vm295 = vcmp.lt.s32.totalorder %v293, 512
        %vm296 = vmand %vm294, %vm295
        %297 = vst.msk [vmem:[%s268] sm:$0xf] %vm296, %v292
        %v298 = vld [vmem:[%s275] sm:$0xf]
        %v299 = vadd.f32 %v288, %v289
        %v300 = vadd.f32 %v298, %v299
        %301 = vst.msk [vmem:[%s275] sm:$0xf] %vm296, %v300
        %s302 = sand.u32 %s116, 1
        %s303 = scalar_lea.sflag [#allocation4], %s302
        %s304 = sand.u32 %s116, 1
        %s305 = smul.addr %s304, 4
        %s306 = scalar_lea.vmem [#allocation7], %s305
        %s307 = sand.u32 %s144, 1
        %s308 = scalar_lea.sflag [#allocation9], %s307
        %s309 = sand.u32 %s144, 1
        %s310 = smul.addr %s309, 4
        %s311 = scalar_lea.vmem [#allocation8], %s310
        // Predicated region
        $region41: #{tpu_custom_call.1} parent=27 // pred_check
          %p312 = pneg %p126
        $region42: #{tpu_custom_call.1} parent=27 // pred_check_branch
          %314 = sbr.rel (%p312) target = $region44
        $region43: #{tpu_custom_call.1} parent=27 // pred_region
          %316 = vsyncadd %s303, 0
          %s317 = smul.addr %s33, 4
          %s318 = smul.addr %s32, 4
          %s319 = sadd.s32 %s317, %s318
          %s320 = scalar_lea.hbm %s2, %s319
          %s322 = sshll.u32 %s306, 4
          %s323 = int_to_ptr.vmem [resolvable:$true] %s322
          %s324 = sshll.u32 %s320, 4
          %s325 = int_to_ptr.hbm [resolvable:$true] %s324
          %327 = dma.vmem_to_hbm [thread:$0]  %s323, 64, %s325, %s303
        $region44: #{tpu_custom_call.1} parent=27 // pred_fallthru
          _
        // Predicated region
        $region45: #{tpu_custom_call.1} parent=27 // pred_check
          %p328 = pneg %p154
        $region46: #{tpu_custom_call.1} parent=27 // pred_check_branch
          %330 = sbr.rel (%p328) target = $region48
        $region47: #{tpu_custom_call.1} parent=27 // pred_region
          %332 = vsyncadd %s308, 0
          %s333 = smul.addr %s33, 4
          %s334 = smul.addr %s32, 4
          %s335 = sadd.s32 %s333, %s334
          %s336 = scalar_lea.hbm %s3, %s335
          %s338 = sshll.u32 %s311, 4
          %s339 = int_to_ptr.vmem [resolvable:$true] %s338
          %s340 = sshll.u32 %s336, 4
          %s341 = int_to_ptr.hbm [resolvable:$true] %s340
          %343 = dma.vmem_to_hbm [thread:$0]  %s339, 64, %s341, %s308
        $region48: #{tpu_custom_call.1} parent=27 // pred_fallthru
          _
      $region28: #{tpu_custom_call.1} parent=5 // pred_fallthru
        _
      %p344 = scmp.le.s32.totalorder 2, %s22
      // Predicated region
      $region49: #{tpu_custom_call.1} parent=5 // pred_check
        %p345 = pneg %p344
      $region50: #{tpu_custom_call.1} parent=5 // pred_check_branch
        %347 = sbr.rel (%p345) target = $region52
      $region51: #{tpu_custom_call.1} parent=5 // pred_region
        %s348 = ssub.s32 %s22, 2
        // Predicated region
        $region53: #{tpu_custom_call.1} parent=51 // pred_check
          %p349 = pneg %p132
        $region54: #{tpu_custom_call.1} parent=51 // pred_check_branch
          %351 = sbr.rel (%p349) target = $region56
        $region55: #{tpu_custom_call.1} parent=51 // pred_region
          %s352 = sand.u32 %s117, 1
          %s353 = scalar_lea.sflag [#allocation4], %s352
          %s354 = sand.u32 %s117, 1
          %s355 = smul.addr %s354, 4
          %s356 = scalar_lea.vmem [#allocation7], %s355
          %358 = dma.done %s353, 64
        $region56: #{tpu_custom_call.1} parent=51 // pred_fallthru
          _
        // Predicated region
        $region57: #{tpu_custom_call.1} parent=51 // pred_check
          %p359 = pneg %p160
        $region58: #{tpu_custom_call.1} parent=51 // pred_check_branch
          %361 = sbr.rel (%p359) target = $region60
        $region59: #{tpu_custom_call.1} parent=51 // pred_region
          %s362 = sand.u32 %s145, 1
          %s363 = scalar_lea.sflag [#allocation9], %s362
          %s364 = sand.u32 %s145, 1
          %s365 = smul.addr %s364, 4
          %s366 = scalar_lea.vmem [#allocation8], %s365
          %368 = dma.done %s363, 64
        $region60: #{tpu_custom_call.1} parent=51 // pred_fallthru
          _
      $region52: #{tpu_custom_call.1} parent=5 // pred_fallthru
        _
    $region6: #{tpu_custom_call.1} parent=1 // loop_footer
      %s26 = sadd.s32 1, %s22
    $region7: #{tpu_custom_call.1} parent=1 // loop_footer_branch
      %21 = sbr.rel target = $region3
    $region8: #{tpu_custom_call.1} parent=1 // loop_exit
      _
    %369 = vsyncpa [#allocation3], 1
    %s370 = scalar_lea.sflag [#allocation3], 1
    %371 = vsyncpa %s370, 1
    %372 = vsyncpa [#allocation6], 1
    %s373 = scalar_lea.sflag [#allocation6], 1
    %374 = vsyncpa %s373, 1
    %375 = vsyncpa [#allocation4], 1
    %s376 = scalar_lea.sflag [#allocation4], 1
    %377 = vsyncpa %s376, 1
    %378 = vsyncpa [#allocation9], 1
    %s379 = scalar_lea.sflag [#allocation9], 1
    %380 = vsyncpa %s379, 1

</llo_original>
